<compile_context>
chip_gen: v7x
topology: tpu7x:2x2x1
jax: 0.10.0
libtpu: 0.0.40
codegen_flags: <defaults>
</compile_context>

<pallas_src>
import functools

import jax
import jax.numpy as jnp
from jax.experimental import pallas as pl
from jax.experimental.pallas import tpu as pltpu


def _round_up(n, m):
    return ((n + m - 1) // m) * m


def _slab_offsets(input_dim, hidden_dim):
    """Row offsets of each sub-tensor inside the packed weight slab (8-aligned)."""
    r_wx = 0
    r_wh = _round_up(input_dim, 8)
    r_b = r_wh + hidden_dim
    r_wfc = _round_up(r_b + 1, 8)
    r_bfc = r_wfc + hidden_dim
    rows = _round_up(r_bfc + 1, 8)
    return r_wx, r_wh, r_b, r_wfc, r_bfc, rows


def _seeker_rnn_kernel(x_ref, w_ref, out_ref, *, D, H, Opad):
    B, T, _ = x_ref.shape
    G = 4 * H
    r_wx, r_wh, r_b, r_wfc, r_bfc, _ = _slab_offsets(D, H)

    # Static sub-views of the packed weight slab (single input DMA).
    wx = w_ref[r_wx:r_wx + D, :G]            # (D, 4H)
    wh = w_ref[r_wh:r_wh + H, :G]            # (H, 4H)
    b = w_ref[r_b:r_b + 1, :G]               # (1, 4H)
    wfc = w_ref[r_wfc:r_wfc + H, :Opad]      # (H, Opad)
    bfc = w_ref[r_bfc:r_bfc + 1, :Opad]      # (1, Opad)

    # Hoisted x-path: one MXU op for all timesteps, guaranteed off the serial
    # h-chain; bias folded in once here (no per-step bias add/broadcast).
    x_flat = x_ref[...].reshape(B * T, D)                       # b-major rows
    xw = jnp.dot(x_flat, wx, preferred_element_type=jnp.float32)
    xw = (xw + jnp.broadcast_to(b, (B * T, G))).reshape(B, T, G)

    def sigmoid(v):                          # single native tanh EUP pass
        return 0.5 * (jnp.tanh(0.5 * v) + 1.0)

    h = jnp.zeros((B, H), jnp.float32)
    c = jnp.zeros((B, H), jnp.float32)

    # Fully-unrolled recurrence; h/c live in vregs as loop carries.
    for t in range(T):
        if t == 0:
            gates = xw[:, 0, :]              # h0 == 0 -> skip the recurrent dot
        else:
            gates = (jnp.dot(h, wh, preferred_element_type=jnp.float32)
                     + xw[:, t, :])          # (B, 4H), 4H = 256 lanes
        # Gate column order in the slab is (f, i, o, g) -- reordered offline.
        f_g = sigmoid(gates[:, 0 * H:1 * H])
        i_g = sigmoid(gates[:, 1 * H:2 * H])
        o_g = sigmoid(gates[:, 2 * H:3 * H])
        g_g = jnp.tanh(gates[:, 3 * H:4 * H])
        c = f_g * c + i_g * g_g
        h = o_g * jnp.tanh(c)

    # fc(relu(h_T)); FC columns zero-padded to Opad lanes.  Pack all three
    # results into one lane-dense slab -> one unmasked store, one output DMA.
    out_fc = (jnp.dot(jnp.maximum(h, 0.0), wfc,
                      preferred_element_type=jnp.float32)
              + jnp.broadcast_to(bfc, (B, Opad)))
    out_ref[...] = jnp.concatenate([out_fc, h, c], axis=1)      # (B, Opad+2H)


def prepare_seeker_rnn_weights(w_ih, w_hh, b_ih, b_hh, fc_w, fc_b):
    """One-time offline re-layout into a single packed, lane-padded f32 slab."""
    four_h, D = w_ih.shape
    H = four_h // 4
    O = fc_w.shape[0]
    Opad = _round_up(O, 128)                 # next multiple of 128 (lane-dense)
    G = 4 * H
    W = max(G, Opad)

    def reorder(m):
        # PyTorch gate order along the 4H axis is (i, f, g, o); store (f, i, o, g).
        i, f, g, o = (m[..., k * H:(k + 1) * H] for k in range(4))
        return jnp.concatenate([f, i, o, g], axis=-1)

    wx = reorder(jnp.asarray(w_ih, jnp.float32).T)                       # (D, 4H)
    wh = reorder(jnp.asarray(w_hh, jnp.float32).T)                       # (H, 4H)
    b = reorder((jnp.asarray(b_ih, jnp.float32)
                 + jnp.asarray(b_hh, jnp.float32)).reshape(1, G))        # (1, 4H)
    wfc = jnp.asarray(fc_w, jnp.float32).T                               # (H, O)
    bfc = jnp.asarray(fc_b, jnp.float32).reshape(1, O)                   # (1, O)

    r_wx, r_wh, r_b, r_wfc, r_bfc, rows = _slab_offsets(D, H)
    slab = jnp.zeros((rows, W), jnp.float32)
    slab = slab.at[r_wx:r_wx + D, :G].set(wx)
    slab = slab.at[r_wh:r_wh + H, :G].set(wh)
    slab = slab.at[r_b:r_b + 1, :G].set(b)
    slab = slab.at[r_wfc:r_wfc + H, :O].set(wfc)
    slab = slab.at[r_bfc:r_bfc + 1, :O].set(bfc)
    return slab, dict(input_dim=D, hidden_dim=H, num_outputs=O)


@functools.partial(jax.jit, static_argnames=("hidden_dim", "num_outputs"))
def seeker_rnn_forward(x, w_slab, *, hidden_dim, num_outputs):
    """x: (B, T, D) float32.  Returns (out (B,O), (h_n (1,B,H), c_n (1,B,H)))."""
    B, T, D = x.shape
    H = hidden_dim
    Opad = _round_up(num_outputs, 128)

    vmem = pl.BlockSpec(memory_space=pltpu.MemorySpace.VMEM)
    packed = pl.pallas_call(
        functools.partial(_seeker_rnn_kernel, D=D, H=H, Opad=Opad),
        out_shape=jax.ShapeDtypeStruct((B, Opad + 2 * H), jnp.float32),
        in_specs=[vmem, vmem],
        out_specs=vmem,
    )(x.astype(jnp.float32), w_slab)

    out = packed[:, :num_outputs]
    # PyTorch returns hidden as (num_layers=1, B, H)
    h_n = packed[:, Opad:Opad + H][None]
    c_n = packed[:, Opad + H:Opad + 2 * H][None]
    return out, (h_n, c_n)


def _reference_forward(x, w_ih, w_hh, b_ih, b_hh, fc_w, fc_b):
    """Pure-JAX reference mirroring torch.nn.LSTM + Linear semantics."""
    B, T, D = x.shape
    H = w_ih.shape[0] // 4

    def step(carry, x_t):
        h, c = carry
        gates = x_t @ w_ih.T + b_ih + h @ w_hh.T + b_hh
        i, f, g, o = jnp.split(gates, 4, axis=-1)
        i, f, o = jax.nn.sigmoid(i), jax.nn.sigmoid(f), jax.nn.sigmoid(o)
        g = jnp.tanh(g)
        c = f * c + i * g
        h = o * jnp.tanh(c)
        return (h, c), h

    h0 = jnp.zeros((B, H), jnp.float32)
    c0 = jnp.zeros((B, H), jnp.float32)
    (h_n, c_n), hs = jax.lax.scan(step, (h0, c0), jnp.transpose(x, (1, 0, 2)))
    last = hs[-1]
    out = jnp.maximum(last, 0.0) @ fc_w.T + fc_b
    return out, (h_n[None], c_n[None])


if __name__ == "__main__":
    # Module defaults: input_dim=8, hidden_dim=64, output_dim=4
    B, T, D, H, O = 2, 8, 8, 64, 4

    key = jax.random.PRNGKey(0)
    ks = jax.random.split(key, 7)
    bound = 1.0 / jnp.sqrt(H)  # PyTorch LSTM/Linear uniform init bound

    x = jax.random.normal(ks[0], (B, T, D), dtype=jnp.float32)
    w_ih = jax.random.uniform(ks[1], (4 * H, D), jnp.float32, -bound, bound)
    w_hh = jax.random.uniform(ks[2], (4 * H, H), jnp.float32, -bound, bound)
    b_ih = jax.random.uniform(ks[3], (4 * H,), jnp.float32, -bound, bound)
    b_hh = jax.random.uniform(ks[4], (4 * H,), jnp.float32, -bound, bound)
    fc_w = jax.random.uniform(ks[5], (O, H), jnp.float32, -bound, bound)
    fc_b = jax.random.uniform(ks[6], (O,), jnp.float32, -bound, bound)

    # One-time weight re-layout / packing (kept out of the jitted forward).
    w_slab, meta = prepare_seeker_rnn_weights(w_ih, w_hh, b_ih, b_hh, fc_w, fc_b)

    out, (h_n, c_n) = seeker_rnn_forward(
        x, w_slab, hidden_dim=meta["hidden_dim"],
        num_outputs=meta["num_outputs"])
    jax.block_until_ready((out, h_n, c_n))

    ref_out, (ref_h, ref_c) = _reference_forward(x, w_ih, w_hh, b_ih, b_hh,
                                                 fc_w, fc_b)
    assert out.shape == (B, O) and h_n.shape == (1, B, H) and c_n.shape == (1, B, H)
    assert jnp.allclose(out, ref_out, atol=1e-5, rtol=1e-5)
    assert jnp.allclose(h_n, ref_h, atol=1e-5, rtol=1e-5)
    assert jnp.allclose(c_n, ref_c, atol=1e-5, rtol=1e-5)

    print("KERNEL_OK")
</pallas_src>

<mosaic_0001>
module attributes {stable_mosaic.version = 11 : i64} {
  func.func @_seeker_rnn_kernel(%arg0: memref<2x8x8xf32, #tpu.memory_space<vmem>>, %arg1: memref<152x256xf32, #tpu.memory_space<vmem>>, %arg2: memref<2x256xf32, #tpu.memory_space<vmem>>) attributes {dimension_semantics = [], scalar_prefetch = 0 : i64, scratch_operands = 0 : i64, tpu.core_type = #tpu.core_type<tc>} {
    %c0 = arith.constant 0 : index
    %c0_0 = arith.constant 0 : index
    %0 = vector.load %arg1[%c0, %c0_0] : memref<152x256xf32, #tpu.memory_space<vmem>>, vector<8x256xf32>
    %c8 = arith.constant 8 : index
    %c0_1 = arith.constant 0 : index
    %1 = vector.load %arg1[%c8, %c0_1] : memref<152x256xf32, #tpu.memory_space<vmem>>, vector<64x256xf32>
    %c72 = arith.constant 72 : index
    %c0_2 = arith.constant 0 : index
    %2 = vector.load %arg1[%c72, %c0_2] : memref<152x256xf32, #tpu.memory_space<vmem>>, vector<1x256xf32>
    %c80 = arith.constant 80 : index
    %c0_3 = arith.constant 0 : index
    %3 = vector.load %arg1[%c80, %c0_3] : memref<152x256xf32, #tpu.memory_space<vmem>>, vector<64x128xf32>
    %c144 = arith.constant 144 : index
    %c0_4 = arith.constant 0 : index
    %4 = vector.load %arg1[%c144, %c0_4] : memref<152x256xf32, #tpu.memory_space<vmem>>, vector<1x128xf32>
    %c0_5 = arith.constant 0 : index
    %c0_6 = arith.constant 0 : index
    %c0_7 = arith.constant 0 : index
    %5 = vector.load %arg0[%c0_5, %c0_6, %c0_7] : memref<2x8x8xf32, #tpu.memory_space<vmem>>, vector<2x8x8xf32>
    %6 = vector.shape_cast %5 : vector<2x8x8xf32> to vector<16x8xf32>
    %cst = arith.constant dense<0.000000e+00> : vector<16x256xf32>
    %7 = tpu.matmul %6, %0, %cst {dimension_numbers = #tpu.dot_dimension_numbers<[1], [0], [0], [1], [0, 0, 1, 1], [], []>} : vector<16x8xf32>, vector<8x256xf32>, vector<16x256xf32> -> vector<16x256xf32>
    %8 = vector.shape_cast %2 : vector<1x256xf32> to vector<1x256xf32>
    %9 = vector.broadcast %8 : vector<1x256xf32> to vector<16x256xf32>
    %10 = arith.addf %7, %9 : vector<16x256xf32>
    %11 = vector.shape_cast %10 : vector<16x256xf32> to vector<2x8x256xf32>
    %cst_8 = arith.constant 0.000000e+00 : f32
    %12 = vector.broadcast %cst_8 : f32 to vector<2x64xf32>
    %13 = vector.extract_strided_slice %11 {offsets = [0, 0, 0], sizes = [2, 1, 256], strides = [1, 1, 1]} : vector<2x8x256xf32> to vector<2x1x256xf32>
    %14 = vector.shape_cast %13 : vector<2x1x256xf32> to vector<2x256xf32>
    %15 = vector.extract_strided_slice %14 {offsets = [0, 0], sizes = [2, 64], strides = [1, 1]} : vector<2x256xf32> to vector<2x64xf32>
    %cst_9 = arith.constant 5.000000e-01 : f32
    %16 = vector.broadcast %cst_9 : f32 to vector<2x64xf32>
    %17 = arith.mulf %16, %15 : vector<2x64xf32>
    %18 = math.tanh %17 : vector<2x64xf32>
    %cst_10 = arith.constant 1.000000e+00 : f32
    %19 = vector.broadcast %cst_10 : f32 to vector<2x64xf32>
    %20 = arith.addf %18, %19 : vector<2x64xf32>
    %cst_11 = arith.constant 5.000000e-01 : f32
    %21 = vector.broadcast %cst_11 : f32 to vector<2x64xf32>
    %22 = arith.mulf %21, %20 : vector<2x64xf32>
    %23 = vector.extract_strided_slice %14 {offsets = [0, 64], sizes = [2, 64], strides = [1, 1]} : vector<2x256xf32> to vector<2x64xf32>
    %cst_12 = arith.constant 5.000000e-01 : f32
    %24 = vector.broadcast %cst_12 : f32 to vector<2x64xf32>
    %25 = arith.mulf %24, %23 : vector<2x64xf32>
    %26 = math.tanh %25 : vector<2x64xf32>
    %cst_13 = arith.constant 1.000000e+00 : f32
    %27 = vector.broadcast %cst_13 : f32 to vector<2x64xf32>
    %28 = arith.addf %26, %27 : vector<2x64xf32>
    %cst_14 = arith.constant 5.000000e-01 : f32
    %29 = vector.broadcast %cst_14 : f32 to vector<2x64xf32>
    %30 = arith.mulf %29, %28 : vector<2x64xf32>
    %31 = vector.extract_strided_slice %14 {offsets = [0, 128], sizes = [2, 64], strides = [1, 1]} : vector<2x256xf32> to vector<2x64xf32>
    %cst_15 = arith.constant 5.000000e-01 : f32
    %32 = vector.broadcast %cst_15 : f32 to vector<2x64xf32>
    %33 = arith.mulf %32, %31 : vector<2x64xf32>
    %34 = math.tanh %33 : vector<2x64xf32>
    %cst_16 = arith.constant 1.000000e+00 : f32
    %35 = vector.broadcast %cst_16 : f32 to vector<2x64xf32>
    %36 = arith.addf %34, %35 : vector<2x64xf32>
    %cst_17 = arith.constant 5.000000e-01 : f32
    %37 = vector.broadcast %cst_17 : f32 to vector<2x64xf32>
    %38 = arith.mulf %37, %36 : vector<2x64xf32>
    %39 = vector.extract_strided_slice %14 {offsets = [0, 192], sizes = [2, 64], strides = [1, 1]} : vector<2x256xf32> to vector<2x64xf32>
    %40 = math.tanh %39 : vector<2x64xf32>
    %41 = arith.mulf %22, %12 : vector<2x64xf32>
    %42 = arith.mulf %30, %40 : vector<2x64xf32>
    %43 = arith.addf %41, %42 : vector<2x64xf32>
    %44 = math.tanh %43 : vector<2x64xf32>
    %45 = arith.mulf %38, %44 : vector<2x64xf32>
    %cst_18 = arith.constant dense<0.000000e+00> : vector<2x256xf32>
    %46 = tpu.matmul %45, %1, %cst_18 {dimension_numbers = #tpu.dot_dimension_numbers<[1], [0], [0], [1], [0, 0, 1, 1], [], []>} : vector<2x64xf32>, vector<64x256xf32>, vector<2x256xf32> -> vector<2x256xf32>
    %47 = vector.extract_strided_slice %11 {offsets = [0, 1, 0], sizes = [2, 1, 256], strides = [1, 1, 1]} : vector<2x8x256xf32> to vector<2x1x256xf32>
    %48 = vector.shape_cast %47 : vector<2x1x256xf32> to vector<2x256xf32>
    %49 = arith.addf %46, %48 : vector<2x256xf32>
    %50 = vector.extract_strided_slice %49 {offsets = [0, 0], sizes = [2, 64], strides = [1, 1]} : vector<2x256xf32> to vector<2x64xf32>
    %cst_19 = arith.constant 5.000000e-01 : f32
    %51 = vector.broadcast %cst_19 : f32 to vector<2x64xf32>
    %52 = arith.mulf %51, %50 : vector<2x64xf32>
    %53 = math.tanh %52 : vector<2x64xf32>
    %cst_20 = arith.constant 1.000000e+00 : f32
    %54 = vector.broadcast %cst_20 : f32 to vector<2x64xf32>
    %55 = arith.addf %53, %54 : vector<2x64xf32>
    %cst_21 = arith.constant 5.000000e-01 : f32
    %56 = vector.broadcast %cst_21 : f32 to vector<2x64xf32>
    %57 = arith.mulf %56, %55 : vector<2x64xf32>
    %58 = vector.extract_strided_slice %49 {offsets = [0, 64], sizes = [2, 64], strides = [1, 1]} : vector<2x256xf32> to vector<2x64xf32>
    %cst_22 = arith.constant 5.000000e-01 : f32
    %59 = vector.broadcast %cst_22 : f32 to vector<2x64xf32>
    %60 = arith.mulf %59, %58 : vector<2x64xf32>
    %61 = math.tanh %60 : vector<2x64xf32>
    %cst_23 = arith.constant 1.000000e+00 : f32
    %62 = vector.broadcast %cst_23 : f32 to vector<2x64xf32>
    %63 = arith.addf %61, %62 : vector<2x64xf32>
    %cst_24 = arith.constant 5.000000e-01 : f32
    %64 = vector.broadcast %cst_24 : f32 to vector<2x64xf32>
    %65 = arith.mulf %64, %63 : vector<2x64xf32>
    %66 = vector.extract_strided_slice %49 {offsets = [0, 128], sizes = [2, 64], strides = [1, 1]} : vector<2x256xf32> to vector<2x64xf32>
    %cst_25 = arith.constant 5.000000e-01 : f32
    %67 = vector.broadcast %cst_25 : f32 to vector<2x64xf32>
    %68 = arith.mulf %67, %66 : vector<2x64xf32>
    %69 = math.tanh %68 : vector<2x64xf32>
    %cst_26 = arith.constant 1.000000e+00 : f32
    %70 = vector.broadcast %cst_26 : f32 to vector<2x64xf32>
    %71 = arith.addf %69, %70 : vector<2x64xf32>
    %cst_27 = arith.constant 5.000000e-01 : f32
    %72 = vector.broadcast %cst_27 : f32 to vector<2x64xf32>
    %73 = arith.mulf %72, %71 : vector<2x64xf32>
    %74 = vector.extract_strided_slice %49 {offsets = [0, 192], sizes = [2, 64], strides = [1, 1]} : vector<2x256xf32> to vector<2x64xf32>
    %75 = math.tanh %74 : vector<2x64xf32>
    %76 = arith.mulf %57, %43 : vector<2x64xf32>
    %77 = arith.mulf %65, %75 : vector<2x64xf32>
    %78 = arith.addf %76, %77 : vector<2x64xf32>
    %79 = math.tanh %78 : vector<2x64xf32>
    %80 = arith.mulf %73, %79 : vector<2x64xf32>
    %cst_28 = arith.constant dense<0.000000e+00> : vector<2x256xf32>
    %81 = tpu.matmul %80, %1, %cst_28 {dimension_numbers = #tpu.dot_dimension_numbers<[1], [0], [0], [1], [0, 0, 1, 1], [], []>} : vector<2x64xf32>, vector<64x256xf32>, vector<2x256xf32> -> vector<2x256xf32>
    %82 = vector.extract_strided_slice %11 {offsets = [0, 2, 0], sizes = [2, 1, 256], strides = [1, 1, 1]} : vector<2x8x256xf32> to vector<2x1x256xf32>
    %83 = vector.shape_cast %82 : vector<2x1x256xf32> to vector<2x256xf32>
    %84 = arith.addf %81, %83 : vector<2x256xf32>
    %85 = vector.extract_strided_slice %84 {offsets = [0, 0], sizes = [2, 64], strides = [1, 1]} : vector<2x256xf32> to vector<2x64xf32>
    %cst_29 = arith.constant 5.000000e-01 : f32
    %86 = vector.broadcast %cst_29 : f32 to vector<2x64xf32>
    %87 = arith.mulf %86, %85 : vector<2x64xf32>
    %88 = math.tanh %87 : vector<2x64xf32>
    %cst_30 = arith.constant 1.000000e+00 : f32
    %89 = vector.broadcast %cst_30 : f32 to vector<2x64xf32>
    %90 = arith.addf %88, %89 : vector<2x64xf32>
    %cst_31 = arith.constant 5.000000e-01 : f32
    %91 = vector.broadcast %cst_31 : f32 to vector<2x64xf32>
    %92 = arith.mulf %91, %90 : vector<2x64xf32>
    %93 = vector.extract_strided_slice %84 {offsets = [0, 64], sizes = [2, 64], strides = [1, 1]} : vector<2x256xf32> to vector<2x64xf32>
    %cst_32 = arith.constant 5.000000e-01 : f32
    %94 = vector.broadcast %cst_32 : f32 to vector<2x64xf32>
    %95 = arith.mulf %94, %93 : vector<2x64xf32>
    %96 = math.tanh %95 : vector<2x64xf32>
    %cst_33 = arith.constant 1.000000e+00 : f32
    %97 = vector.broadcast %cst_33 : f32 to vector<2x64xf32>
    %98 = arith.addf %96, %97 : vector<2x64xf32>
    %cst_34 = arith.constant 5.000000e-01 : f32
    %99 = vector.broadcast %cst_34 : f32 to vector<2x64xf32>
    %100 = arith.mulf %99, %98 : vector<2x64xf32>
    %101 = vector.extract_strided_slice %84 {offsets = [0, 128], sizes = [2, 64], strides = [1, 1]} : vector<2x256xf32> to vector<2x64xf32>
    %cst_35 = arith.constant 5.000000e-01 : f32
    %102 = vector.broadcast %cst_35 : f32 to vector<2x64xf32>
    %103 = arith.mulf %102, %101 : vector<2x64xf32>
    %104 = math.tanh %103 : vector<2x64xf32>
    %cst_36 = arith.constant 1.000000e+00 : f32
    %105 = vector.broadcast %cst_36 : f32 to vector<2x64xf32>
    %106 = arith.addf %104, %105 : vector<2x64xf32>
    %cst_37 = arith.constant 5.000000e-01 : f32
    %107 = vector.broadcast %cst_37 : f32 to vector<2x64xf32>
    %108 = arith.mulf %107, %106 : vector<2x64xf32>
    %109 = vector.extract_strided_slice %84 {offsets = [0, 192], sizes = [2, 64], strides = [1, 1]} : vector<2x256xf32> to vector<2x64xf32>
    %110 = math.tanh %109 : vector<2x64xf32>
    %111 = arith.mulf %92, %78 : vector<2x64xf32>
    %112 = arith.mulf %100, %110 : vector<2x64xf32>
    %113 = arith.addf %111, %112 : vector<2x64xf32>
    %114 = math.tanh %113 : vector<2x64xf32>
    %115 = arith.mulf %108, %114 : vector<2x64xf32>
    %cst_38 = arith.constant dense<0.000000e+00> : vector<2x256xf32>
    %116 = tpu.matmul %115, %1, %cst_38 {dimension_numbers = #tpu.dot_dimension_numbers<[1], [0], [0], [1], [0, 0, 1, 1], [], []>} : vector<2x64xf32>, vector<64x256xf32>, vector<2x256xf32> -> vector<2x256xf32>
    %117 = vector.extract_strided_slice %11 {offsets = [0, 3, 0], sizes = [2, 1, 256], strides = [1, 1, 1]} : vector<2x8x256xf32> to vector<2x1x256xf32>
    %118 = vector.shape_cast %117 : vector<2x1x256xf32> to vector<2x256xf32>
    %119 = arith.addf %116, %118 : vector<2x256xf32>
    %120 = vector.extract_strided_slice %119 {offsets = [0, 0], sizes = [2, 64], strides = [1, 1]} : vector<2x256xf32> to vector<2x64xf32>
    %cst_39 = arith.constant 5.000000e-01 : f32
    %121 = vector.broadcast %cst_39 : f32 to vector<2x64xf32>
    %122 = arith.mulf %121, %120 : vector<2x64xf32>
    %123 = math.tanh %122 : vector<2x64xf32>
    %cst_40 = arith.constant 1.000000e+00 : f32
    %124 = vector.broadcast %cst_40 : f32 to vector<2x64xf32>
    %125 = arith.addf %123, %124 : vector<2x64xf32>
    %cst_41 = arith.constant 5.000000e-01 : f32
    %126 = vector.broadcast %cst_41 : f32 to vector<2x64xf32>
    %127 = arith.mulf %126, %125 : vector<2x64xf32>
    %128 = vector.extract_strided_slice %119 {offsets = [0, 64], sizes = [2, 64], strides = [1, 1]} : vector<2x256xf32> to vector<2x64xf32>
    %cst_42 = arith.constant 5.000000e-01 : f32
    %129 = vector.broadcast %cst_42 : f32 to vector<2x64xf32>
    %130 = arith.mulf %129, %128 : vector<2x64xf32>
    %131 = math.tanh %130 : vector<2x64xf32>
    %cst_43 = arith.constant 1.000000e+00 : f32
    %132 = vector.broadcast %cst_43 : f32 to vector<2x64xf32>
    %133 = arith.addf %131, %132 : vector<2x64xf32>
    %cst_44 = arith.constant 5.000000e-01 : f32
    %134 = vector.broadcast %cst_44 : f32 to vector<2x64xf32>
    %135 = arith.mulf %134, %133 : vector<2x64xf32>
    %136 = vector.extract_strided_slice %119 {offsets = [0, 128], sizes = [2, 64], strides = [1, 1]} : vector<2x256xf32> to vector<2x64xf32>
    %cst_45 = arith.constant 5.000000e-01 : f32
    %137 = vector.broadcast %cst_45 : f32 to vector<2x64xf32>
    %138 = arith.mulf %137, %136 : vector<2x64xf32>
    %139 = math.tanh %138 : vector<2x64xf32>
    %cst_46 = arith.constant 1.000000e+00 : f32
    %140 = vector.broadcast %cst_46 : f32 to vector<2x64xf32>
    %141 = arith.addf %139, %140 : vector<2x64xf32>
    %cst_47 = arith.constant 5.000000e-01 : f32
    %142 = vector.broadcast %cst_47 : f32 to vector<2x64xf32>
    %143 = arith.mulf %142, %141 : vector<2x64xf32>
    %144 = vector.extract_strided_slice %119 {offsets = [0, 192], sizes = [2, 64], strides = [1, 1]} : vector<2x256xf32> to vector<2x64xf32>
    %145 = math.tanh %144 : vector<2x64xf32>
    %146 = arith.mulf %127, %113 : vector<2x64xf32>
    %147 = arith.mulf %135, %145 : vector<2x64xf32>
    %148 = arith.addf %146, %147 : vector<2x64xf32>
    %149 = math.tanh %148 : vector<2x64xf32>
    %150 = arith.mulf %143, %149 : vector<2x64xf32>
    %cst_48 = arith.constant dense<0.000000e+00> : vector<2x256xf32>
    %151 = tpu.matmul %150, %1, %cst_48 {dimension_numbers = #tpu.dot_dimension_numbers<[1], [0], [0], [1], [0, 0, 1, 1], [], []>} : vector<2x64xf32>, vector<64x256xf32>, vector<2x256xf32> -> vector<2x256xf32>
    %152 = vector.extract_strided_slice %11 {offsets = [0, 4, 0], sizes = [2, 1, 256], strides = [1, 1, 1]} : vector<2x8x256xf32> to vector<2x1x256xf32>
    %153 = vector.shape_cast %152 : vector<2x1x256xf32> to vector<2x256xf32>
    %154 = arith.addf %151, %153 : vector<2x256xf32>
    %155 = vector.extract_strided_slice %154 {offsets = [0, 0], sizes = [2, 64], strides = [1, 1]} : vector<2x256xf32> to vector<2x64xf32>
    %cst_49 = arith.constant 5.000000e-01 : f32
    %156 = vector.broadcast %cst_49 : f32 to vector<2x64xf32>
    %157 = arith.mulf %156, %155 : vector<2x64xf32>
    %158 = math.tanh %157 : vector<2x64xf32>
    %cst_50 = arith.constant 1.000000e+00 : f32
    %159 = vector.broadcast %cst_50 : f32 to vector<2x64xf32>
    %160 = arith.addf %158, %159 : vector<2x64xf32>
    %cst_51 = arith.constant 5.000000e-01 : f32
    %161 = vector.broadcast %cst_51 : f32 to vector<2x64xf32>
    %162 = arith.mulf %161, %160 : vector<2x64xf32>
    %163 = vector.extract_strided_slice %154 {offsets = [0, 64], sizes = [2, 64], strides = [1, 1]} : vector<2x256xf32> to vector<2x64xf32>
    %cst_52 = arith.constant 5.000000e-01 : f32
    %164 = vector.broadcast %cst_52 : f32 to vector<2x64xf32>
    %165 = arith.mulf %164, %163 : vector<2x64xf32>
    %166 = math.tanh %165 : vector<2x64xf32>
    %cst_53 = arith.constant 1.000000e+00 : f32
    %167 = vector.broadcast %cst_53 : f32 to vector<2x64xf32>
    %168 = arith.addf %166, %167 : vector<2x64xf32>
    %cst_54 = arith.constant 5.000000e-01 : f32
    %169 = vector.broadcast %cst_54 : f32 to vector<2x64xf32>
    %170 = arith.mulf %169, %168 : vector<2x64xf32>
    %171 = vector.extract_strided_slice %154 {offsets = [0, 128], sizes = [2, 64], strides = [1, 1]} : vector<2x256xf32> to vector<2x64xf32>
    %cst_55 = arith.constant 5.000000e-01 : f32
    %172 = vector.broadcast %cst_55 : f32 to vector<2x64xf32>
    %173 = arith.mulf %172, %171 : vector<2x64xf32>
    %174 = math.tanh %173 : vector<2x64xf32>
    %cst_56 = arith.constant 1.000000e+00 : f32
    %175 = vector.broadcast %cst_56 : f32 to vector<2x64xf32>
    %176 = arith.addf %174, %175 : vector<2x64xf32>
    %cst_57 = arith.constant 5.000000e-01 : f32
    %177 = vector.broadcast %cst_57 : f32 to vector<2x64xf32>
    %178 = arith.mulf %177, %176 : vector<2x64xf32>
    %179 = vector.extract_strided_slice %154 {offsets = [0, 192], sizes = [2, 64], strides = [1, 1]} : vector<2x256xf32> to vector<2x64xf32>
    %180 = math.tanh %179 : vector<2x64xf32>
    %181 = arith.mulf %162, %148 : vector<2x64xf32>
    %182 = arith.mulf %170, %180 : vector<2x64xf32>
    %183 = arith.addf %181, %182 : vector<2x64xf32>
    %184 = math.tanh %183 : vector<2x64xf32>
    %185 = arith.mulf %178, %184 : vector<2x64xf32>
    %cst_58 = arith.constant dense<0.000000e+00> : vector<2x256xf32>
    %186 = tpu.matmul %185, %1, %cst_58 {dimension_numbers = #tpu.dot_dimension_numbers<[1], [0], [0], [1], [0, 0, 1, 1], [], []>} : vector<2x64xf32>, vector<64x256xf32>, vector<2x256xf32> -> vector<2x256xf32>
    %187 = vector.extract_strided_slice %11 {offsets = [0, 5, 0], sizes = [2, 1, 256], strides = [1, 1, 1]} : vector<2x8x256xf32> to vector<2x1x256xf32>
    %188 = vector.shape_cast %187 : vector<2x1x256xf32> to vector<2x256xf32>
    %189 = arith.addf %186, %188 : vector<2x256xf32>
    %190 = vector.extract_strided_slice %189 {offsets = [0, 0], sizes = [2, 64], strides = [1, 1]} : vector<2x256xf32> to vector<2x64xf32>
    %cst_59 = arith.constant 5.000000e-01 : f32
    %191 = vector.broadcast %cst_59 : f32 to vector<2x64xf32>
    %192 = arith.mulf %191, %190 : vector<2x64xf32>
    %193 = math.tanh %192 : vector<2x64xf32>
    %cst_60 = arith.constant 1.000000e+00 : f32
    %194 = vector.broadcast %cst_60 : f32 to vector<2x64xf32>
    %195 = arith.addf %193, %194 : vector<2x64xf32>
    %cst_61 = arith.constant 5.000000e-01 : f32
    %196 = vector.broadcast %cst_61 : f32 to vector<2x64xf32>
    %197 = arith.mulf %196, %195 : vector<2x64xf32>
    %198 = vector.extract_strided_slice %189 {offsets = [0, 64], sizes = [2, 64], strides = [1, 1]} : vector<2x256xf32> to vector<2x64xf32>
    %cst_62 = arith.constant 5.000000e-01 : f32
    %199 = vector.broadcast %cst_62 : f32 to vector<2x64xf32>
    %200 = arith.mulf %199, %198 : vector<2x64xf32>
    %201 = math.tanh %200 : vector<2x64xf32>
    %cst_63 = arith.constant 1.000000e+00 : f32
    %202 = vector.broadcast %cst_63 : f32 to vector<2x64xf32>
    %203 = arith.addf %201, %202 : vector<2x64xf32>
    %cst_64 = arith.constant 5.000000e-01 : f32
    %204 = vector.broadcast %cst_64 : f32 to vector<2x64xf32>
    %205 = arith.mulf %204, %203 : vector<2x64xf32>
    %206 = vector.extract_strided_slice %189 {offsets = [0, 128], sizes = [2, 64], strides = [1, 1]} : vector<2x256xf32> to vector<2x64xf32>
    %cst_65 = arith.constant 5.000000e-01 : f32
    %207 = vector.broadcast %cst_65 : f32 to vector<2x64xf32>
    %208 = arith.mulf %207, %206 : vector<2x64xf32>
    %209 = math.tanh %208 : vector<2x64xf32>
    %cst_66 = arith.constant 1.000000e+00 : f32
    %210 = vector.broadcast %cst_66 : f32 to vector<2x64xf32>
    %211 = arith.addf %209, %210 : vector<2x64xf32>
    %cst_67 = arith.constant 5.000000e-01 : f32
    %212 = vector.broadcast %cst_67 : f32 to vector<2x64xf32>
    %213 = arith.mulf %212, %211 : vector<2x64xf32>
    %214 = vector.extract_strided_slice %189 {offsets = [0, 192], sizes = [2, 64], strides = [1, 1]} : vector<2x256xf32> to vector<2x64xf32>
    %215 = math.tanh %214 : vector<2x64xf32>
    %216 = arith.mulf %197, %183 : vector<2x64xf32>
    %217 = arith.mulf %205, %215 : vector<2x64xf32>
    %218 = arith.addf %216, %217 : vector<2x64xf32>
    %219 = math.tanh %218 : vector<2x64xf32>
    %220 = arith.mulf %213, %219 : vector<2x64xf32>
    %cst_68 = arith.constant dense<0.000000e+00> : vector<2x256xf32>
    %221 = tpu.matmul %220, %1, %cst_68 {dimension_numbers = #tpu.dot_dimension_numbers<[1], [0], [0], [1], [0, 0, 1, 1], [], []>} : vector<2x64xf32>, vector<64x256xf32>, vector<2x256xf32> -> vector<2x256xf32>
    %222 = vector.extract_strided_slice %11 {offsets = [0, 6, 0], sizes = [2, 1, 256], strides = [1, 1, 1]} : vector<2x8x256xf32> to vector<2x1x256xf32>
    %223 = vector.shape_cast %222 : vector<2x1x256xf32> to vector<2x256xf32>
    %224 = arith.addf %221, %223 : vector<2x256xf32>
    %225 = vector.extract_strided_slice %224 {offsets = [0, 0], sizes = [2, 64], strides = [1, 1]} : vector<2x256xf32> to vector<2x64xf32>
    %cst_69 = arith.constant 5.000000e-01 : f32
    %226 = vector.broadcast %cst_69 : f32 to vector<2x64xf32>
    %227 = arith.mulf %226, %225 : vector<2x64xf32>
    %228 = math.tanh %227 : vector<2x64xf32>
    %cst_70 = arith.constant 1.000000e+00 : f32
    %229 = vector.broadcast %cst_70 : f32 to vector<2x64xf32>
    %230 = arith.addf %228, %229 : vector<2x64xf32>
    %cst_71 = arith.constant 5.000000e-01 : f32
    %231 = vector.broadcast %cst_71 : f32 to vector<2x64xf32>
    %232 = arith.mulf %231, %230 : vector<2x64xf32>
    %233 = vector.extract_strided_slice %224 {offsets = [0, 64], sizes = [2, 64], strides = [1, 1]} : vector<2x256xf32> to vector<2x64xf32>
    %cst_72 = arith.constant 5.000000e-01 : f32
    %234 = vector.broadcast %cst_72 : f32 to vector<2x64xf32>
    %235 = arith.mulf %234, %233 : vector<2x64xf32>
    %236 = math.tanh %235 : vector<2x64xf32>
    %cst_73 = arith.constant 1.000000e+00 : f32
    %237 = vector.broadcast %cst_73 : f32 to vector<2x64xf32>
    %238 = arith.addf %236, %237 : vector<2x64xf32>
    %cst_74 = arith.constant 5.000000e-01 : f32
    %239 = vector.broadcast %cst_74 : f32 to vector<2x64xf32>
    %240 = arith.mulf %239, %238 : vector<2x64xf32>
    %241 = vector.extract_strided_slice %224 {offsets = [0, 128], sizes = [2, 64], strides = [1, 1]} : vector<2x256xf32> to vector<2x64xf32>
    %cst_75 = arith.constant 5.000000e-01 : f32
    %242 = vector.broadcast %cst_75 : f32 to vector<2x64xf32>
    %243 = arith.mulf %242, %241 : vector<2x64xf32>
    %244 = math.tanh %243 : vector<2x64xf32>
    %cst_76 = arith.constant 1.000000e+00 : f32
    %245 = vector.broadcast %cst_76 : f32 to vector<2x64xf32>
    %246 = arith.addf %244, %245 : vector<2x64xf32>
    %cst_77 = arith.constant 5.000000e-01 : f32
    %247 = vector.broadcast %cst_77 : f32 to vector<2x64xf32>
    %248 = arith.mulf %247, %246 : vector<2x64xf32>
    %249 = vector.extract_strided_slice %224 {offsets = [0, 192], sizes = [2, 64], strides = [1, 1]} : vector<2x256xf32> to vector<2x64xf32>
    %250 = math.tanh %249 : vector<2x64xf32>
    %251 = arith.mulf %232, %218 : vector<2x64xf32>
    %252 = arith.mulf %240, %250 : vector<2x64xf32>
    %253 = arith.addf %251, %252 : vector<2x64xf32>
    %254 = math.tanh %253 : vector<2x64xf32>
    %255 = arith.mulf %248, %254 : vector<2x64xf32>
    %cst_78 = arith.constant dense<0.000000e+00> : vector<2x256xf32>
    %256 = tpu.matmul %255, %1, %cst_78 {dimension_numbers = #tpu.dot_dimension_numbers<[1], [0], [0], [1], [0, 0, 1, 1], [], []>} : vector<2x64xf32>, vector<64x256xf32>, vector<2x256xf32> -> vector<2x256xf32>
    %257 = vector.extract_strided_slice %11 {offsets = [0, 7, 0], sizes = [2, 1, 256], strides = [1, 1, 1]} : vector<2x8x256xf32> to vector<2x1x256xf32>
    %258 = vector.shape_cast %257 : vector<2x1x256xf32> to vector<2x256xf32>
    %259 = arith.addf %256, %258 : vector<2x256xf32>
    %260 = vector.extract_strided_slice %259 {offsets = [0, 0], sizes = [2, 64], strides = [1, 1]} : vector<2x256xf32> to vector<2x64xf32>
    %cst_79 = arith.constant 5.000000e-01 : f32
    %261 = vector.broadcast %cst_79 : f32 to vector<2x64xf32>
    %262 = arith.mulf %261, %260 : vector<2x64xf32>
    %263 = math.tanh %262 : vector<2x64xf32>
    %cst_80 = arith.constant 1.000000e+00 : f32
    %264 = vector.broadcast %cst_80 : f32 to vector<2x64xf32>
    %265 = arith.addf %263, %264 : vector<2x64xf32>
    %cst_81 = arith.constant 5.000000e-01 : f32
    %266 = vector.broadcast %cst_81 : f32 to vector<2x64xf32>
    %267 = arith.mulf %266, %265 : vector<2x64xf32>
    %268 = vector.extract_strided_slice %259 {offsets = [0, 64], sizes = [2, 64], strides = [1, 1]} : vector<2x256xf32> to vector<2x64xf32>
    %cst_82 = arith.constant 5.000000e-01 : f32
    %269 = vector.broadcast %cst_82 : f32 to vector<2x64xf32>
    %270 = arith.mulf %269, %268 : vector<2x64xf32>
    %271 = math.tanh %270 : vector<2x64xf32>
    %cst_83 = arith.constant 1.000000e+00 : f32
    %272 = vector.broadcast %cst_83 : f32 to vector<2x64xf32>
    %273 = arith.addf %271, %272 : vector<2x64xf32>
    %cst_84 = arith.constant 5.000000e-01 : f32
    %274 = vector.broadcast %cst_84 : f32 to vector<2x64xf32>
    %275 = arith.mulf %274, %273 : vector<2x64xf32>
    %276 = vector.extract_strided_slice %259 {offsets = [0, 128], sizes = [2, 64], strides = [1, 1]} : vector<2x256xf32> to vector<2x64xf32>
    %cst_85 = arith.constant 5.000000e-01 : f32
    %277 = vector.broadcast %cst_85 : f32 to vector<2x64xf32>
    %278 = arith.mulf %277, %276 : vector<2x64xf32>
    %279 = math.tanh %278 : vector<2x64xf32>
    %cst_86 = arith.constant 1.000000e+00 : f32
    %280 = vector.broadcast %cst_86 : f32 to vector<2x64xf32>
    %281 = arith.addf %279, %280 : vector<2x64xf32>
    %cst_87 = arith.constant 5.000000e-01 : f32
    %282 = vector.broadcast %cst_87 : f32 to vector<2x64xf32>
    %283 = arith.mulf %282, %281 : vector<2x64xf32>
    %284 = vector.extract_strided_slice %259 {offsets = [0, 192], sizes = [2, 64], strides = [1, 1]} : vector<2x256xf32> to vector<2x64xf32>
    %285 = math.tanh %284 : vector<2x64xf32>
    %286 = arith.mulf %267, %253 : vector<2x64xf32>
    %287 = arith.mulf %275, %285 : vector<2x64xf32>
    %288 = arith.addf %286, %287 : vector<2x64xf32>
    %289 = math.tanh %288 : vector<2x64xf32>
    %290 = arith.mulf %283, %289 : vector<2x64xf32>
    %cst_88 = arith.constant 0.000000e+00 : f32
    %291 = vector.broadcast %cst_88 : f32 to vector<2x64xf32>
    %292 = arith.maximumf %290, %291 : vector<2x64xf32>
    %cst_89 = arith.constant dense<0.000000e+00> : vector<2x128xf32>
    %293 = tpu.matmul %292, %3, %cst_89 {dimension_numbers = #tpu.dot_dimension_numbers<[1], [0], [0], [1], [0, 0, 1, 1], [], []>} : vector<2x64xf32>, vector<64x128xf32>, vector<2x128xf32> -> vector<2x128xf32>
    %294 = vector.shape_cast %4 : vector<1x128xf32> to vector<1x128xf32>
    %295 = vector.broadcast %294 : vector<1x128xf32> to vector<2x128xf32>
    %296 = arith.addf %293, %295 : vector<2x128xf32>
    %297 = tpu.concatenate %296, %290, %288 in 1 : vector<2x128xf32>, vector<2x64xf32>, vector<2x64xf32> -> vector<2x256xf32>
    %c0_90 = arith.constant 0 : index
    %c0_91 = arith.constant 0 : index
    %298 = vector.load %arg2[%c0_90, %c0_91] : memref<2x256xf32, #tpu.memory_space<vmem>>, vector<2x256xf32>
    tpu.vector_store %arg2[%c0_90, %c0_91], %297 {strides = array<i32>} : memref<2x256xf32, #tpu.memory_space<vmem>>, vector<2x256xf32>,
    return
  }
}

</mosaic_0001>

<llo_original>
// kernel: seeker_rnn_forward.1
$region0: #{seeker_rnn_forward.1}
  #allocation0 [shape = 'u32[]', space=smem, size = 0x4, offset = 0x4, fixed_abs, tag = 'smem constant byte address 0x4 - core index']
  #allocation1 [shape = 'u32[144,128]{1,0:T(1,128)}', space=vmem, size = 0x12000, scoped, tag = 'internal scratch']
  %s0 = inlined_call_operand.hbm [shape: f32[2,8,8], index: 0, kind: input, shape index: {}]
  %s1 = inlined_call_operand.hbm [shape: f32[152,256], index: 1, kind: input, shape index: {}]
  %s2 = inlined_call_operand.vmem [shape: f32[2,256], index: 2, kind: output, shape index: {}]
  %s3 = sld [smem:[#allocation0]]
  $region26: #{seeker_rnn_forward.1} parent=0
    _
  %s5 = ssub.s32 1, %s3
  %s6 = scalar_select 0, %s5, %s3
  $region1: #{seeker_rnn_forward.1} parent=0
    #allocation2 [shape = 'u8[8192]{0}', space=vmem, size = 0x2000, scoped, tag = 'input window, operand 0, single buffered']
    #allocation3 [shape = 's32[1]{0}', space=sflag, size = 0x4, scoped, tag = 'scoped memory for seeker_rnn_forward.1']
    #allocation4 [shape = 'u8[155648]{0}', space=vmem, size = 0x26000, scoped, tag = 'input window, operand 1, single buffered']
    #allocation5 [shape = 's32[1]{0}', space=sflag, size = 0x4, scoped, tag = 'scoped memory for seeker_rnn_forward.1']
    %7 = vsyncpa [#allocation3], 0
    %8 = vsyncpa [#allocation5], 0
    // Predicated region
    $region2: #{seeker_rnn_forward.1} parent=1 // pred_check
      _
    $region3: #{seeker_rnn_forward.1} parent=1 // pred_check_branch
      %10 = sbr.rel (0) target = $region5
    $region4: #{seeker_rnn_forward.1} parent=1 // pred_region
      %s12 = ssub.s32 256, 256
      %13 = vsyncadd [#allocation3], %s12
      %s14 = sshll.u32 [#allocation2], 4
      %s15 = int_to_ptr.vmem [resolvable:$true] %s14
      %20 = dma.hbm_to_vmem [thread:$0]  %s0, 256, %s15, [#allocation3], 128, 128, 8
    $region5: #{seeker_rnn_forward.1} parent=1 // pred_fallthru
      _
    // Predicated region
    $region6: #{seeker_rnn_forward.1} parent=1 // pred_check
      _
    $region7: #{seeker_rnn_forward.1} parent=1 // pred_check_branch
      %22 = sbr.rel (0) target = $region9
    $region8: #{seeker_rnn_forward.1} parent=1 // pred_region
      %s24 = ssub.s32 4864, 4864
      %25 = vsyncadd [#allocation5], %s24
      %s26 = sshll.u32 [#allocation4], 4
      %s27 = int_to_ptr.vmem [resolvable:$true] %s26
      %32 = dma.hbm_to_vmem [thread:$0]  %s1, 4864, %s27, [#allocation5], 256, 256, 16
    $region9: #{seeker_rnn_forward.1} parent=1 // pred_fallthru
      _
    // Predicated region
    $region10: #{seeker_rnn_forward.1} parent=1 // pred_check
      _
    $region11: #{seeker_rnn_forward.1} parent=1 // pred_check_branch
      %34 = sbr.rel (0) target = $region13
    $region12: #{seeker_rnn_forward.1} parent=1 // pred_region
      %35 = dma.done [#allocation3], 256
    $region13: #{seeker_rnn_forward.1} parent=1 // pred_fallthru
      _
    // Predicated region
    $region14: #{seeker_rnn_forward.1} parent=1 // pred_check
      _
    $region15: #{seeker_rnn_forward.1} parent=1 // pred_check_branch
      %37 = sbr.rel (0) target = $region17
    $region16: #{seeker_rnn_forward.1} parent=1 // pred_region
      %38 = dma.done [#allocation5], 4864
    $region17: #{seeker_rnn_forward.1} parent=1 // pred_fallthru
      _
    %v39 = vld [vmem:[#allocation4] sm:$0xff]
    %v40 = vld [vmem:[#allocation4 + $0x8] sm:$0xff]
    %v41 = vld [vmem:[#allocation4 + $0x10] sm:$0xff]
    %v42 = vld [vmem:[#allocation4 + $0x18] sm:$0xff]
    %v43 = vld [vmem:[#allocation4 + $0x20] sm:$0xff]
    %v44 = vld [vmem:[#allocation4 + $0x28] sm:$0xff]
    %v45 = vld [vmem:[#allocation4 + $0x30] sm:$0xff]
    %v46 = vld [vmem:[#allocation4 + $0x38] sm:$0xff]
    %v47 = vld [vmem:[#allocation4 + $0x40] sm:$0xff]
    %v48 = vld [vmem:[#allocation4 + $0x48] sm:$0xff]
    %v49 = vld [vmem:[#allocation4 + $0x50] sm:$0xff]
    %v50 = vld [vmem:[#allocation4 + $0x58] sm:$0xff]
    %v51 = vld [vmem:[#allocation4 + $0x60] sm:$0xff]
    %v52 = vld [vmem:[#allocation4 + $0x68] sm:$0xff]
    %v53 = vld [vmem:[#allocation4 + $0x70] sm:$0xff]
    %v54 = vld [vmem:[#allocation4 + $0x78] sm:$0xff]
    %v55 = vld [vmem:[#allocation4 + $0x80] sm:$0xff]
    %v56 = vld [vmem:[#allocation4 + $0x88] sm:$0xff]
    %s57 = scalar_lea.vmem [#allocation4], 144
    %v58 = vld [vmem:[%s57] ss:$8 sm:$0x3]
    %v59 = vld [vmem:[#allocation4 + $0xa0] sm:$0xff]
    %v60 = vld [vmem:[#allocation4 + $0xb0] sm:$0xff]
    %v61 = vld [vmem:[#allocation4 + $0xc0] sm:$0xff]
    %v62 = vld [vmem:[#allocation4 + $0xd0] sm:$0xff]
    %v63 = vld [vmem:[#allocation4 + $0xe0] sm:$0xff]
    %v64 = vld [vmem:[#allocation4 + $0xf0] sm:$0xff]
    %v65 = vld [vmem:[#allocation4 + $0x100] sm:$0xff]
    %v66 = vld [vmem:[#allocation4 + $0x110] sm:$0xff]
    %v67 = vld [vmem:[#allocation4 + $0x120] ss:$0 sm:$0xff]
    %v68 = vld [vmem:[#allocation2] sm:$0xff]
    %v69 = vld [vmem:[#allocation2 + $0x8] sm:$0xff]
    %v71 = vlaneseq
    %v72 = vshrl.u32 %v71, 7
    %v73 = vsub.s32 0, %v72
    %v74 = vrot.slane %v58, %v73
    %v75 = vlaneseq
    %v76 = vshrl.u32 %v75, 7
    %v77 = vsub.s32 1, %v76
    %v78 = vrot.slane %v58, %v77
    %vm81 = vcmask 64512
    %v83 = vsel %vm81, %v68, 0
    %v86 = vsel %vm81, %v69, 0
    %88 = vmatprep.subr.mxu0 %v40
    %89 = vmatpush1.msra.mxu0 %v39
    %90 = vmatprep.subr.mxu0 0.0
    %91 = vmatpush1.msra.mxu0 0.0
    %92 = vmatprep.subr.mxu0 0.0
    %93 = vmatpush1.msra.mxu0 0.0
    %94 = vmatprep.subr.mxu0 0.0
    %95 = vmatpush1.msra.mxu0 0.0
    %96 = vmatprep.subr.mxu0 0.0
    %97 = vmatpush1.msra.mxu0 0.0
    %98 = vmatprep.subr.mxu0 0.0
    %99 = vmatpush1.msra.mxu0 0.0
    %100 = vmatprep.subr.mxu0 0.0
    %101 = vmatpush1.msra.mxu0 0.0
    %102 = vmatprep.subr.mxu0 0.0
    %103 = vmatpush1.msra.mxu0 0.0
    %104 = vmatprep.subr.mxu0 0.0
    %105 = vmatpush1.msra.mxu0 0.0
    %106 = vmatprep.subr.mxu0 0.0
    %107 = vmatpush1.msra.mxu0 0.0
    %108 = vmatprep.subr.mxu0 0.0
    %109 = vmatpush1.msra.mxu0 0.0
    %110 = vmatprep.subr.mxu0 0.0
    %111 = vmatpush1.msra.mxu0 0.0
    %112 = vmatprep.subr.mxu0 0.0
    %113 = vmatpush1.msra.mxu0 0.0
    %114 = vmatprep.subr.mxu0 0.0
    %115 = vmatpush1.msra.mxu0 0.0
    %116 = vmatprep.subr.mxu0 0.0
    %117 = vmatpush1.msra.mxu0 0.0
    %118 = vmatprep.subr.mxu0 0.0
    %119 = vmatpush1.msra.mxu0 0.0
    %120 = vmatprep.subr.mxu0 0.0
    %121 = vmatpush1.msra.mxu0 0.0
    %122 = vmatprep.subr.mxu0 0.0
    %123 = vmatpush1.msra.mxu0 0.0
    %124 = vmatprep.subr.mxu0 0.0
    %125 = vmatpush1.msra.mxu0 0.0
    %126 = vmatprep.subr.mxu0 0.0
    %127 = vmatpush1.msra.mxu0 0.0
    %128 = vmatprep.subr.mxu0 0.0
    %129 = vmatpush1.msra.mxu0 0.0
    %130 = vmatprep.subr.mxu0 0.0
    %131 = vmatpush1.msra.mxu0 0.0
    %132 = vmatprep.subr.mxu0 0.0
    %133 = vmatpush1.msra.mxu0 0.0
    %134 = vmatprep.subr.mxu0 0.0
    %135 = vmatpush1.msra.mxu0 0.0
    %136 = vmatprep.subr.mxu0 0.0
    %137 = vmatpush1.msra.mxu0 0.0
    %138 = vmatprep.subr.mxu0 0.0
    %139 = vmatpush1.msra.mxu0 0.0
    %140 = vmatprep.subr.mxu0 0.0
    %141 = vmatpush1.msra.mxu0 0.0
    %142 = vmatprep.subr.mxu0 0.0
    %143 = vmatpush1.msra.mxu0 0.0
    %144 = vmatprep.subr.mxu0 0.0
    %145 = vmatpush1.msra.mxu0 0.0
    %146 = vmatprep.subr.mxu0 0.0
    %147 = vmatpush1.msra.mxu0 0.0
    %148 = vmatprep.subr.mxu0 0.0
    %149 = vmatpush1.msra.mxu0 0.0
    %150 = vmatprep.subr.mxu0 0.0
    %151 = vmatpush1.msra.mxu0 0.0
    %152 = vmatprep.mubr.f32.mxu0 0.0
    %153 = vmatmul.mubr.f32.gmra.mrb[0].mxu0 %v83
    %v154 = vpop.f32.mrb[0].mxu0
    %v155 = vadd.f32 %v74, %v154
    %v156 = vpop.f32.mrb[0].mxu0
    %v157 = vadd.f32 %v78, %v156
    %158 = vmatprep.mubr.f32.mxu0 0.0
    %159 = vmatmul.mubr.f32.gmra.mrb[0].mxu0 %v86
    %v160 = vpop.f32.mrb[0].mxu0
    %v161 = vadd.f32 %v74, %v160
    %v162 = vpop.f32.mrb[0].mxu0
    %v163 = vadd.f32 %v78, %v162
    %164 = vdwg.mxu0
    %v165 = vmul.f32 %v155, 0.5
    %v166 = vmul.f32 %v161, 0.5
    %v167 = vtanh.pop %v165
    %v168 = vtanh.pop %v166
    %v169 = vadd.f32 %v167, 1.0
    %v170 = vadd.f32 %v168, 1.0
    %v171 = vmul.f32 %v169, 0.5
    %v172 = vmul.f32 %v170, 0.5
    %v173 = vmul.f32 %v157, 0.5
    %v174 = vmul.f32 %v163, 0.5
    %v175 = vtanh.pop %v173
    %v176 = vtanh.pop %v174
    %v177 = vadd.f32 %v175, 1.0
    %v178 = vadd.f32 %v176, 1.0
    %v179 = vmul.f32 %v177, 0.5
    %v180 = vmul.f32 %v178, 0.5
    %v181 = vtanh.pop %v157
    %v182 = vtanh.pop %v163
    %v183 = vmul.f32 %v171, 0.0
    %v184 = vmul.f32 %v172, 0.0
    %v185 = vmul.f32 %v171, %v181
    %v186 = vmul.f32 %v172, %v182
    %189 = vrot.lane.b32.xlu0 %v185, 64
    %v190 = vpop.permute.xlu0 %189
    %191 = vrot.lane.b32.xlu0 %v186, 64
    %v192 = vpop.permute.xlu0 %191
    %v195 = vadd.f32 %v183, %v190
    %v196 = vadd.f32 %v184, %v192
    %v197 = vtanh.pop %v195
    %v198 = vtanh.pop %v196
    %v199 = vmul.f32 %v179, %v197
    %v200 = vmul.f32 %v180, %v198
    %v203 = vrot.slane %v200, 7
    %vm204 = vcmask 1041409
    %v205 = vsel %vm204, %v203, %v199
    %v210 = vrot.slane %v155, 1
    %v211 = vsel %vm204, %v161, %v210
    %v212 = vrot.slane %v157, 1
    %v213 = vsel %vm204, %v163, %v212
    %vm216 = vcmask 523264
    %v217 = vsel %vm216, %v205, 0
    %219 = vmatprep.subr.mxu0 %v42
    %220 = vmatpush1.msra.mxu0 %v41
    %221 = vmatprep.subr.mxu0 %v44
    %222 = vmatpush1.msra.mxu0 %v43
    %223 = vmatprep.subr.mxu0 %v46
    %224 = vmatpush1.msra.mxu0 %v45
    %225 = vmatprep.subr.mxu0 %v48
    %226 = vmatpush1.msra.mxu0 %v47
    %227 = vmatprep.subr.mxu0 %v50
    %228 = vmatpush1.msra.mxu0 %v49
    %229 = vmatprep.subr.mxu0 %v52
    %230 = vmatpush1.msra.mxu0 %v51
    %231 = vmatprep.subr.mxu0 %v54
    %232 = vmatpush1.msra.mxu0 %v53
    %233 = vmatprep.subr.mxu0 %v56
    %234 = vmatpush1.msra.mxu0 %v55
    %235 = vmatprep.subr.mxu0 0.0
    %236 = vmatpush1.msra.mxu0 0.0
    %237 = vmatprep.subr.mxu0 0.0
    %238 = vmatpush1.msra.mxu0 0.0
    %239 = vmatprep.subr.mxu0 0.0
    %240 = vmatpush1.msra.mxu0 0.0
    %241 = vmatprep.subr.mxu0 0.0
    %242 = vmatpush1.msra.mxu0 0.0
    %243 = vmatprep.subr.mxu0 0.0
    %244 = vmatpush1.msra.mxu0 0.0
    %245 = vmatprep.subr.mxu0 0.0
    %246 = vmatpush1.msra.mxu0 0.0
    %247 = vmatprep.subr.mxu0 0.0
    %248 = vmatpush1.msra.mxu0 0.0
    %249 = vmatprep.subr.mxu0 0.0
    %250 = vmatpush1.msra.mxu0 0.0
    %251 = vmatprep.subr.mxu0 0.0
    %252 = vmatpush1.msra.mxu0 0.0
    %253 = vmatprep.subr.mxu0 0.0
    %254 = vmatpush1.msra.mxu0 0.0
    %255 = vmatprep.subr.mxu0 0.0
    %256 = vmatpush1.msra.mxu0 0.0
    %257 = vmatprep.subr.mxu0 0.0
    %258 = vmatpush1.msra.mxu0 0.0
    %259 = vmatprep.subr.mxu0 0.0
    %260 = vmatpush1.msra.mxu0 0.0
    %261 = vmatprep.subr.mxu0 0.0
    %262 = vmatpush1.msra.mxu0 0.0
    %263 = vmatprep.subr.mxu0 0.0
    %264 = vmatpush1.msra.mxu0 0.0
    %265 = vmatprep.subr.mxu0 0.0
    %266 = vmatpush1.msra.mxu0 0.0
    %267 = vmatprep.subr.mxu0 0.0
    %268 = vmatpush1.msra.mxu0 0.0
    %269 = vmatprep.subr.mxu0 0.0
    %270 = vmatpush1.msra.mxu0 0.0
    %271 = vmatprep.subr.mxu0 0.0
    %272 = vmatpush1.msra.mxu0 0.0
    %273 = vmatprep.subr.mxu0 0.0
    %274 = vmatpush1.msra.mxu0 0.0
    %275 = vmatprep.subr.mxu0 0.0
    %276 = vmatpush1.msra.mxu0 0.0
    %277 = vmatprep.subr.mxu0 0.0
    %278 = vmatpush1.msra.mxu0 0.0
    %279 = vmatprep.subr.mxu0 0.0
    %280 = vmatpush1.msra.mxu0 0.0
    %281 = vmatprep.subr.mxu0 0.0
    %282 = vmatpush1.msra.mxu0 0.0
    %283 = vmatprep.mubr.f32.mxu0 0.0
    %284 = vmatmul.mubr.f32.gmra.mrb[0].mxu0 %v217
    %v285 = vpop.f32.mrb[0].mxu0
    %v286 = vadd.f32 %v211, %v285
    %v287 = vpop.f32.mrb[0].mxu0
    %v288 = vadd.f32 %v213, %v287
    %289 = vdwg.mxu0
    %v290 = vmul.f32 %v286, 0.5
    %v291 = vtanh.pop %v290
    %v292 = vadd.f32 %v291, 1.0
    %v293 = vmul.f32 %v292, 0.5
    %v294 = vmul.f32 %v288, 0.5
    %v295 = vtanh.pop %v294
    %v296 = vadd.f32 %v295, 1.0
    %v297 = vmul.f32 %v296, 0.5
    %v298 = vtanh.pop %v288
    %v301 = vrot.slane %v196, 7
    %v302 = vsel %vm204, %v301, %v195
    %v304 = vmul.f32 %v293, %v302
    %v305 = vmul.f32 %v293, %v298
    %307 = vrot.lane.b32.xlu0 %v305, 64
    %v308 = vpop.permute.xlu0 %307
    %v310 = vadd.f32 %v304, %v308
    %v311 = vtanh.pop %v310
    %v312 = vmul.f32 %v297, %v311
    %v313 = vrot.slane %v155, 2
    %v314 = vrot.slane %v161, 1
    %v315 = vsel %vm204, %v314, %v313
    %v316 = vrot.slane %v157, 2
    %v317 = vrot.slane %v163, 1
    %v318 = vsel %vm204, %v317, %v316
    %v322 = vsel %vm216, %v312, 0
    %324 = vmatprep.subr.mxu0 %v42
    %325 = vmatpush1.msra.mxu0 %v41
    %326 = vmatprep.subr.mxu0 %v44
    %327 = vmatpush1.msra.mxu0 %v43
    %328 = vmatprep.subr.mxu0 %v46
    %329 = vmatpush1.msra.mxu0 %v45
    %330 = vmatprep.subr.mxu0 %v48
    %331 = vmatpush1.msra.mxu0 %v47
    %332 = vmatprep.subr.mxu0 %v50
    %333 = vmatpush1.msra.mxu0 %v49
    %334 = vmatprep.subr.mxu0 %v52
    %335 = vmatpush1.msra.mxu0 %v51
    %336 = vmatprep.subr.mxu0 %v54
    %337 = vmatpush1.msra.mxu0 %v53
    %338 = vmatprep.subr.mxu0 %v56
    %339 = vmatpush1.msra.mxu0 %v55
    %340 = vmatprep.subr.mxu0 0.0
    %341 = vmatpush1.msra.mxu0 0.0
    %342 = vmatprep.subr.mxu0 0.0
    %343 = vmatpush1.msra.mxu0 0.0
    %344 = vmatprep.subr.mxu0 0.0
    %345 = vmatpush1.msra.mxu0 0.0
    %346 = vmatprep.subr.mxu0 0.0
    %347 = vmatpush1.msra.mxu0 0.0
    %348 = vmatprep.subr.mxu0 0.0
    %349 = vmatpush1.msra.mxu0 0.0
    %350 = vmatprep.subr.mxu0 0.0
    %351 = vmatpush1.msra.mxu0 0.0
    %352 = vmatprep.subr.mxu0 0.0
    %353 = vmatpush1.msra.mxu0 0.0
    %354 = vmatprep.subr.mxu0 0.0
    %355 = vmatpush1.msra.mxu0 0.0
    %356 = vmatprep.subr.mxu0 0.0
    %357 = vmatpush1.msra.mxu0 0.0
    %358 = vmatprep.subr.mxu0 0.0
    %359 = vmatpush1.msra.mxu0 0.0
    %360 = vmatprep.subr.mxu0 0.0
    %361 = vmatpush1.msra.mxu0 0.0
    %362 = vmatprep.subr.mxu0 0.0
    %363 = vmatpush1.msra.mxu0 0.0
    %364 = vmatprep.subr.mxu0 0.0
    %365 = vmatpush1.msra.mxu0 0.0
    %366 = vmatprep.subr.mxu0 0.0
    %367 = vmatpush1.msra.mxu0 0.0
    %368 = vmatprep.subr.mxu0 0.0
    %369 = vmatpush1.msra.mxu0 0.0
    %370 = vmatprep.subr.mxu0 0.0
    %371 = vmatpush1.msra.mxu0 0.0
    %372 = vmatprep.subr.mxu0 0.0
    %373 = vmatpush1.msra.mxu0 0.0
    %374 = vmatprep.subr.mxu0 0.0
    %375 = vmatpush1.msra.mxu0 0.0
    %376 = vmatprep.subr.mxu0 0.0
    %377 = vmatpush1.msra.mxu0 0.0
    %378 = vmatprep.subr.mxu0 0.0
    %379 = vmatpush1.msra.mxu0 0.0
    %380 = vmatprep.subr.mxu0 0.0
    %381 = vmatpush1.msra.mxu0 0.0
    %382 = vmatprep.subr.mxu0 0.0
    %383 = vmatpush1.msra.mxu0 0.0
    %384 = vmatprep.subr.mxu0 0.0
    %385 = vmatpush1.msra.mxu0 0.0
    %386 = vmatprep.subr.mxu0 0.0
    %387 = vmatpush1.msra.mxu0 0.0
    %388 = vmatprep.mubr.f32.mxu0 0.0
    %389 = vmatmul.mubr.f32.gmra.mrb[0].mxu0 %v322
    %v390 = vpop.f32.mrb[0].mxu0
    %v391 = vadd.f32 %v315, %v390
    %v392 = vpop.f32.mrb[0].mxu0
    %v393 = vadd.f32 %v318, %v392
    %394 = vdwg.mxu0
    %v395 = vmul.f32 %v391, 0.5
    %v396 = vtanh.pop %v395
    %v397 = vadd.f32 %v396, 1.0
    %v398 = vmul.f32 %v397, 0.5
    %v399 = vmul.f32 %v393, 0.5
    %v400 = vtanh.pop %v399
    %v401 = vadd.f32 %v400, 1.0
    %v402 = vmul.f32 %v401, 0.5
    %v403 = vtanh.pop %v393
    %v404 = vmul.f32 %v398, %v310
    %v405 = vmul.f32 %v398, %v403
    %407 = vrot.lane.b32.xlu0 %v405, 64
    %v408 = vpop.permute.xlu0 %407
    %v410 = vadd.f32 %v404, %v408
    %v411 = vtanh.pop %v410
    %v412 = vmul.f32 %v402, %v411
    %v413 = vrot.slane %v155, 3
    %v414 = vrot.slane %v161, 2
    %v415 = vsel %vm204, %v414, %v413
    %v416 = vrot.slane %v157, 3
    %v417 = vrot.slane %v163, 2
    %v418 = vsel %vm204, %v417, %v416
    %v422 = vsel %vm216, %v412, 0
    %424 = vmatprep.subr.mxu0 %v42
    %425 = vmatpush1.msra.mxu0 %v41
    %426 = vmatprep.subr.mxu0 %v44
    %427 = vmatpush1.msra.mxu0 %v43
    %428 = vmatprep.subr.mxu0 %v46
    %429 = vmatpush1.msra.mxu0 %v45
    %430 = vmatprep.subr.mxu0 %v48
    %431 = vmatpush1.msra.mxu0 %v47
    %432 = vmatprep.subr.mxu0 %v50
    %433 = vmatpush1.msra.mxu0 %v49
    %434 = vmatprep.subr.mxu0 %v52
    %435 = vmatpush1.msra.mxu0 %v51
    %436 = vmatprep.subr.mxu0 %v54
    %437 = vmatpush1.msra.mxu0 %v53
    %438 = vmatprep.subr.mxu0 %v56
    %439 = vmatpush1.msra.mxu0 %v55
    %440 = vmatprep.subr.mxu0 0.0
    %441 = vmatpush1.msra.mxu0 0.0
    %442 = vmatprep.subr.mxu0 0.0
    %443 = vmatpush1.msra.mxu0 0.0
    %444 = vmatprep.subr.mxu0 0.0
    %445 = vmatpush1.msra.mxu0 0.0
    %446 = vmatprep.subr.mxu0 0.0
    %447 = vmatpush1.msra.mxu0 0.0
    %448 = vmatprep.subr.mxu0 0.0
    %449 = vmatpush1.msra.mxu0 0.0
    %450 = vmatprep.subr.mxu0 0.0
    %451 = vmatpush1.msra.mxu0 0.0
    %452 = vmatprep.subr.mxu0 0.0
    %453 = vmatpush1.msra.mxu0 0.0
    %454 = vmatprep.subr.mxu0 0.0
    %455 = vmatpush1.msra.mxu0 0.0
    %456 = vmatprep.subr.mxu0 0.0
    %457 = vmatpush1.msra.mxu0 0.0
    %458 = vmatprep.subr.mxu0 0.0
    %459 = vmatpush1.msra.mxu0 0.0
    %460 = vmatprep.subr.mxu0 0.0
    %461 = vmatpush1.msra.mxu0 0.0
    %462 = vmatprep.subr.mxu0 0.0
    %463 = vmatpush1.msra.mxu0 0.0
    %464 = vmatprep.subr.mxu0 0.0
    %465 = vmatpush1.msra.mxu0 0.0
    %466 = vmatprep.subr.mxu0 0.0
    %467 = vmatpush1.msra.mxu0 0.0
    %468 = vmatprep.subr.mxu0 0.0
    %469 = vmatpush1.msra.mxu0 0.0
    %470 = vmatprep.subr.mxu0 0.0
    %471 = vmatpush1.msra.mxu0 0.0
    %472 = vmatprep.subr.mxu0 0.0
    %473 = vmatpush1.msra.mxu0 0.0
    %474 = vmatprep.subr.mxu0 0.0
    %475 = vmatpush1.msra.mxu0 0.0
    %476 = vmatprep.subr.mxu0 0.0
    %477 = vmatpush1.msra.mxu0 0.0
    %478 = vmatprep.subr.mxu0 0.0
    %479 = vmatpush1.msra.mxu0 0.0
    %480 = vmatprep.subr.mxu0 0.0
    %481 = vmatpush1.msra.mxu0 0.0
    %482 = vmatprep.subr.mxu0 0.0
    %483 = vmatpush1.msra.mxu0 0.0
    %484 = vmatprep.subr.mxu0 0.0
    %485 = vmatpush1.msra.mxu0 0.0
    %486 = vmatprep.subr.mxu0 0.0
    %487 = vmatpush1.msra.mxu0 0.0
    %488 = vmatprep.mubr.f32.mxu0 0.0
    %489 = vmatmul.mubr.f32.gmra.mrb[0].mxu0 %v422
    %v490 = vpop.f32.mrb[0].mxu0
    %v491 = vadd.f32 %v415, %v490
    %v492 = vpop.f32.mrb[0].mxu0
    %v493 = vadd.f32 %v418, %v492
    %494 = vdwg.mxu0
    %v495 = vmul.f32 %v491, 0.5
    %v496 = vtanh.pop %v495
    %v497 = vadd.f32 %v496, 1.0
    %v498 = vmul.f32 %v497, 0.5
    %v499 = vmul.f32 %v493, 0.5
    %v500 = vtanh.pop %v499
    %v501 = vadd.f32 %v500, 1.0
    %v502 = vmul.f32 %v501, 0.5
    %v503 = vtanh.pop %v493
    %v504 = vmul.f32 %v498, %v410
    %v505 = vmul.f32 %v498, %v503
    %507 = vrot.lane.b32.xlu0 %v505, 64
    %v508 = vpop.permute.xlu0 %507
    %v510 = vadd.f32 %v504, %v508
    %v511 = vtanh.pop %v510
    %v512 = vmul.f32 %v502, %v511
    %v513 = vrot.slane %v155, 4
    %v514 = vrot.slane %v161, 3
    %v515 = vsel %vm204, %v514, %v513
    %v516 = vrot.slane %v157, 4
    %v517 = vrot.slane %v163, 3
    %v518 = vsel %vm204, %v517, %v516
    %v522 = vsel %vm216, %v512, 0
    %524 = vmatprep.subr.mxu0 %v42
    %525 = vmatpush1.msra.mxu0 %v41
    %526 = vmatprep.subr.mxu0 %v44
    %527 = vmatpush1.msra.mxu0 %v43
    %528 = vmatprep.subr.mxu0 %v46
    %529 = vmatpush1.msra.mxu0 %v45
    %530 = vmatprep.subr.mxu0 %v48
    %531 = vmatpush1.msra.mxu0 %v47
    %532 = vmatprep.subr.mxu0 %v50
    %533 = vmatpush1.msra.mxu0 %v49
    %534 = vmatprep.subr.mxu0 %v52
    %535 = vmatpush1.msra.mxu0 %v51
    %536 = vmatprep.subr.mxu0 %v54
    %537 = vmatpush1.msra.mxu0 %v53
    %538 = vmatprep.subr.mxu0 %v56
    %539 = vmatpush1.msra.mxu0 %v55
    %540 = vmatprep.subr.mxu0 0.0
    %541 = vmatpush1.msra.mxu0 0.0
    %542 = vmatprep.subr.mxu0 0.0
    %543 = vmatpush1.msra.mxu0 0.0
    %544 = vmatprep.subr.mxu0 0.0
    %545 = vmatpush1.msra.mxu0 0.0
    %546 = vmatprep.subr.mxu0 0.0
    %547 = vmatpush1.msra.mxu0 0.0
    %548 = vmatprep.subr.mxu0 0.0
    %549 = vmatpush1.msra.mxu0 0.0
    %550 = vmatprep.subr.mxu0 0.0
    %551 = vmatpush1.msra.mxu0 0.0
    %552 = vmatprep.subr.mxu0 0.0
    %553 = vmatpush1.msra.mxu0 0.0
    %554 = vmatprep.subr.mxu0 0.0
    %555 = vmatpush1.msra.mxu0 0.0
    %556 = vmatprep.subr.mxu0 0.0
    %557 = vmatpush1.msra.mxu0 0.0
    %558 = vmatprep.subr.mxu0 0.0
    %559 = vmatpush1.msra.mxu0 0.0
    %560 = vmatprep.subr.mxu0 0.0
    %561 = vmatpush1.msra.mxu0 0.0
    %562 = vmatprep.subr.mxu0 0.0
    %563 = vmatpush1.msra.mxu0 0.0
    %564 = vmatprep.subr.mxu0 0.0
    %565 = vmatpush1.msra.mxu0 0.0
    %566 = vmatprep.subr.mxu0 0.0
    %567 = vmatpush1.msra.mxu0 0.0
    %568 = vmatprep.subr.mxu0 0.0
    %569 = vmatpush1.msra.mxu0 0.0
    %570 = vmatprep.subr.mxu0 0.0
    %571 = vmatpush1.msra.mxu0 0.0
    %572 = vmatprep.subr.mxu0 0.0
    %573 = vmatpush1.msra.mxu0 0.0
    %574 = vmatprep.subr.mxu0 0.0
    %575 = vmatpush1.msra.mxu0 0.0
    %576 = vmatprep.subr.mxu0 0.0
    %577 = vmatpush1.msra.mxu0 0.0
    %578 = vmatprep.subr.mxu0 0.0
    %579 = vmatpush1.msra.mxu0 0.0
    %580 = vmatprep.subr.mxu0 0.0
    %581 = vmatpush1.msra.mxu0 0.0
    %582 = vmatprep.subr.mxu0 0.0
    %583 = vmatpush1.msra.mxu0 0.0
    %584 = vmatprep.subr.mxu0 0.0
    %585 = vmatpush1.msra.mxu0 0.0
    %586 = vmatprep.subr.mxu0 0.0
    %587 = vmatpush1.msra.mxu0 0.0
    %588 = vmatprep.mubr.f32.mxu0 0.0
    %589 = vmatmul.mubr.f32.gmra.mrb[0].mxu0 %v522
    %v590 = vpop.f32.mrb[0].mxu0
    %v591 = vadd.f32 %v515, %v590
    %v592 = vpop.f32.mrb[0].mxu0
    %v593 = vadd.f32 %v518, %v592
    %594 = vdwg.mxu0
    %v595 = vmul.f32 %v591, 0.5
    %v596 = vtanh.pop %v595
    %v597 = vadd.f32 %v596, 1.0
    %v598 = vmul.f32 %v597, 0.5
    %v599 = vmul.f32 %v593, 0.5
    %v600 = vtanh.pop %v599
    %v601 = vadd.f32 %v600, 1.0
    %v602 = vmul.f32 %v601, 0.5
    %v603 = vtanh.pop %v593
    %v604 = vmul.f32 %v598, %v510
    %v605 = vmul.f32 %v598, %v603
    %607 = vrot.lane.b32.xlu0 %v605, 64
    %v608 = vpop.permute.xlu0 %607
    %v610 = vadd.f32 %v604, %v608
    %v611 = vtanh.pop %v610
    %v612 = vmul.f32 %v602, %v611
    %v613 = vrot.slane %v155, 5
    %v614 = vrot.slane %v161, 4
    %v615 = vsel %vm204, %v614, %v613
    %v616 = vrot.slane %v157, 5
    %v617 = vrot.slane %v163, 4
    %v618 = vsel %vm204, %v617, %v616
    %v622 = vsel %vm216, %v612, 0
    %624 = vmatprep.subr.mxu0 %v42
    %625 = vmatpush1.msra.mxu0 %v41
    %626 = vmatprep.subr.mxu0 %v44
    %627 = vmatpush1.msra.mxu0 %v43
    %628 = vmatprep.subr.mxu0 %v46
    %629 = vmatpush1.msra.mxu0 %v45
    %630 = vmatprep.subr.mxu0 %v48
    %631 = vmatpush1.msra.mxu0 %v47
    %632 = vmatprep.subr.mxu0 %v50
    %633 = vmatpush1.msra.mxu0 %v49
    %634 = vmatprep.subr.mxu0 %v52
    %635 = vmatpush1.msra.mxu0 %v51
    %636 = vmatprep.subr.mxu0 %v54
    %637 = vmatpush1.msra.mxu0 %v53
    %638 = vmatprep.subr.mxu0 %v56
    %639 = vmatpush1.msra.mxu0 %v55
    %640 = vmatprep.subr.mxu0 0.0
    %641 = vmatpush1.msra.mxu0 0.0
    %642 = vmatprep.subr.mxu0 0.0
    %643 = vmatpush1.msra.mxu0 0.0
    %644 = vmatprep.subr.mxu0 0.0
    %645 = vmatpush1.msra.mxu0 0.0
    %646 = vmatprep.subr.mxu0 0.0
    %647 = vmatpush1.msra.mxu0 0.0
    %648 = vmatprep.subr.mxu0 0.0
    %649 = vmatpush1.msra.mxu0 0.0
    %650 = vmatprep.subr.mxu0 0.0
    %651 = vmatpush1.msra.mxu0 0.0
    %652 = vmatprep.subr.mxu0 0.0
    %653 = vmatpush1.msra.mxu0 0.0
    %654 = vmatprep.subr.mxu0 0.0
    %655 = vmatpush1.msra.mxu0 0.0
    %656 = vmatprep.subr.mxu0 0.0
    %657 = vmatpush1.msra.mxu0 0.0
    %658 = vmatprep.subr.mxu0 0.0
    %659 = vmatpush1.msra.mxu0 0.0
    %660 = vmatprep.subr.mxu0 0.0
    %661 = vmatpush1.msra.mxu0 0.0
    %662 = vmatprep.subr.mxu0 0.0
    %663 = vmatpush1.msra.mxu0 0.0
    %664 = vmatprep.subr.mxu0 0.0
    %665 = vmatpush1.msra.mxu0 0.0
    %666 = vmatprep.subr.mxu0 0.0
    %667 = vmatpush1.msra.mxu0 0.0
    %668 = vmatprep.subr.mxu0 0.0
    %669 = vmatpush1.msra.mxu0 0.0
    %670 = vmatprep.subr.mxu0 0.0
    %671 = vmatpush1.msra.mxu0 0.0
    %672 = vmatprep.subr.mxu0 0.0
    %673 = vmatpush1.msra.mxu0 0.0
    %674 = vmatprep.subr.mxu0 0.0
    %675 = vmatpush1.msra.mxu0 0.0
    %676 = vmatprep.subr.mxu0 0.0
    %677 = vmatpush1.msra.mxu0 0.0
    %678 = vmatprep.subr.mxu0 0.0
    %679 = vmatpush1.msra.mxu0 0.0
    %680 = vmatprep.subr.mxu0 0.0
    %681 = vmatpush1.msra.mxu0 0.0
    %682 = vmatprep.subr.mxu0 0.0
    %683 = vmatpush1.msra.mxu0 0.0
    %684 = vmatprep.subr.mxu0 0.0
    %685 = vmatpush1.msra.mxu0 0.0
    %686 = vmatprep.subr.mxu0 0.0
    %687 = vmatpush1.msra.mxu0 0.0
    %688 = vmatprep.mubr.f32.mxu0 0.0
    %689 = vmatmul.mubr.f32.gmra.mrb[0].mxu0 %v622
    %v690 = vpop.f32.mrb[0].mxu0
    %v691 = vadd.f32 %v615, %v690
    %v692 = vpop.f32.mrb[0].mxu0
    %v693 = vadd.f32 %v618, %v692
    %694 = vdwg.mxu0
    %v695 = vmul.f32 %v691, 0.5
    %v696 = vtanh.pop %v695
    %v697 = vadd.f32 %v696, 1.0
    %v698 = vmul.f32 %v697, 0.5
    %v699 = vmul.f32 %v693, 0.5
    %v700 = vtanh.pop %v699
    %v701 = vadd.f32 %v700, 1.0
    %v702 = vmul.f32 %v701, 0.5
    %v703 = vtanh.pop %v693
    %v704 = vmul.f32 %v698, %v610
    %v705 = vmul.f32 %v698, %v703
    %707 = vrot.lane.b32.xlu0 %v705, 64
    %v708 = vpop.permute.xlu0 %707
    %v710 = vadd.f32 %v704, %v708
    %v711 = vtanh.pop %v710
    %v712 = vmul.f32 %v702, %v711
    %v713 = vrot.slane %v155, 6
    %v714 = vrot.slane %v161, 5
    %v715 = vsel %vm204, %v714, %v713
    %v716 = vrot.slane %v157, 6
    %v717 = vrot.slane %v163, 5
    %v718 = vsel %vm204, %v717, %v716
    %v722 = vsel %vm216, %v712, 0
    %724 = vmatprep.subr.mxu0 %v42
    %725 = vmatpush1.msra.mxu0 %v41
    %726 = vmatprep.subr.mxu0 %v44
    %727 = vmatpush1.msra.mxu0 %v43
    %728 = vmatprep.subr.mxu0 %v46
    %729 = vmatpush1.msra.mxu0 %v45
    %730 = vmatprep.subr.mxu0 %v48
    %731 = vmatpush1.msra.mxu0 %v47
    %732 = vmatprep.subr.mxu0 %v50
    %733 = vmatpush1.msra.mxu0 %v49
    %734 = vmatprep.subr.mxu0 %v52
    %735 = vmatpush1.msra.mxu0 %v51
    %736 = vmatprep.subr.mxu0 %v54
    %737 = vmatpush1.msra.mxu0 %v53
    %738 = vmatprep.subr.mxu0 %v56
    %739 = vmatpush1.msra.mxu0 %v55
    %740 = vmatprep.subr.mxu0 0.0
    %741 = vmatpush1.msra.mxu0 0.0
    %742 = vmatprep.subr.mxu0 0.0
    %743 = vmatpush1.msra.mxu0 0.0
    %744 = vmatprep.subr.mxu0 0.0
    %745 = vmatpush1.msra.mxu0 0.0
    %746 = vmatprep.subr.mxu0 0.0
    %747 = vmatpush1.msra.mxu0 0.0
    %748 = vmatprep.subr.mxu0 0.0
    %749 = vmatpush1.msra.mxu0 0.0
    %750 = vmatprep.subr.mxu0 0.0
    %751 = vmatpush1.msra.mxu0 0.0
    %752 = vmatprep.subr.mxu0 0.0
    %753 = vmatpush1.msra.mxu0 0.0
    %754 = vmatprep.subr.mxu0 0.0
    %755 = vmatpush1.msra.mxu0 0.0
    %756 = vmatprep.subr.mxu0 0.0
    %757 = vmatpush1.msra.mxu0 0.0
    %758 = vmatprep.subr.mxu0 0.0
    %759 = vmatpush1.msra.mxu0 0.0
    %760 = vmatprep.subr.mxu0 0.0
    %761 = vmatpush1.msra.mxu0 0.0
    %762 = vmatprep.subr.mxu0 0.0
    %763 = vmatpush1.msra.mxu0 0.0
    %764 = vmatprep.subr.mxu0 0.0
    %765 = vmatpush1.msra.mxu0 0.0
    %766 = vmatprep.subr.mxu0 0.0
    %767 = vmatpush1.msra.mxu0 0.0
    %768 = vmatprep.subr.mxu0 0.0
    %769 = vmatpush1.msra.mxu0 0.0
    %770 = vmatprep.subr.mxu0 0.0
    %771 = vmatpush1.msra.mxu0 0.0
    %772 = vmatprep.subr.mxu0 0.0
    %773 = vmatpush1.msra.mxu0 0.0
    %774 = vmatprep.subr.mxu0 0.0
    %775 = vmatpush1.msra.mxu0 0.0
    %776 = vmatprep.subr.mxu0 0.0
    %777 = vmatpush1.msra.mxu0 0.0
    %778 = vmatprep.subr.mxu0 0.0
    %779 = vmatpush1.msra.mxu0 0.0
    %780 = vmatprep.subr.mxu0 0.0
    %781 = vmatpush1.msra.mxu0 0.0
    %782 = vmatprep.subr.mxu0 0.0
    %783 = vmatpush1.msra.mxu0 0.0
    %784 = vmatprep.subr.mxu0 0.0
    %785 = vmatpush1.msra.mxu0 0.0
    %786 = vmatprep.subr.mxu0 0.0
    %787 = vmatpush1.msra.mxu0 0.0
    %788 = vmatprep.mubr.f32.mxu0 0.0
    %789 = vmatmul.mubr.f32.gmra.mrb[0].mxu0 %v722
    %v790 = vpop.f32.mrb[0].mxu0
    %v791 = vadd.f32 %v715, %v790
    %v792 = vpop.f32.mrb[0].mxu0
    %v793 = vadd.f32 %v718, %v792
    %794 = vdwg.mxu0
    %v795 = vmul.f32 %v791, 0.5
    %v796 = vtanh.pop %v795
    %v797 = vadd.f32 %v796, 1.0
    %v798 = vmul.f32 %v797, 0.5
    %v799 = vmul.f32 %v793, 0.5
    %v800 = vtanh.pop %v799
    %v801 = vadd.f32 %v800, 1.0
    %v802 = vmul.f32 %v801, 0.5
    %v803 = vtanh.pop %v793
    %v804 = vmul.f32 %v798, %v710
    %v805 = vmul.f32 %v798, %v803
    %807 = vrot.lane.b32.xlu0 %v805, 64
    %v808 = vpop.permute.xlu0 %807
    %v810 = vadd.f32 %v804, %v808
    %v811 = vtanh.pop %v810
    %v812 = vmul.f32 %v802, %v811
    %v813 = vrot.slane %v155, 7
    %v814 = vrot.slane %v161, 6
    %v815 = vsel %vm204, %v814, %v813
    %v816 = vrot.slane %v157, 7
    %v817 = vrot.slane %v163, 6
    %v818 = vsel %vm204, %v817, %v816
    %v822 = vsel %vm216, %v812, 0
    %824 = vmatprep.subr.mxu0 %v42
    %825 = vmatpush1.msra.mxu0 %v41
    %826 = vmatprep.subr.mxu0 %v44
    %827 = vmatpush1.msra.mxu0 %v43
    %828 = vmatprep.subr.mxu0 %v46
    %829 = vmatpush1.msra.mxu0 %v45
    %830 = vmatprep.subr.mxu0 %v48
    %831 = vmatpush1.msra.mxu0 %v47
    %832 = vmatprep.subr.mxu0 %v50
    %833 = vmatpush1.msra.mxu0 %v49
    %834 = vmatprep.subr.mxu0 %v52
    %835 = vmatpush1.msra.mxu0 %v51
    %836 = vmatprep.subr.mxu0 %v54
    %837 = vmatpush1.msra.mxu0 %v53
    %838 = vmatprep.subr.mxu0 %v56
    %839 = vmatpush1.msra.mxu0 %v55
    %840 = vmatprep.subr.mxu0 0.0
    %841 = vmatpush1.msra.mxu0 0.0
    %842 = vmatprep.subr.mxu0 0.0
    %843 = vmatpush1.msra.mxu0 0.0
    %844 = vmatprep.subr.mxu0 0.0
    %845 = vmatpush1.msra.mxu0 0.0
    %846 = vmatprep.subr.mxu0 0.0
    %847 = vmatpush1.msra.mxu0 0.0
    %848 = vmatprep.subr.mxu0 0.0
    %849 = vmatpush1.msra.mxu0 0.0
    %850 = vmatprep.subr.mxu0 0.0
    %851 = vmatpush1.msra.mxu0 0.0
    %852 = vmatprep.subr.mxu0 0.0
    %853 = vmatpush1.msra.mxu0 0.0
    %854 = vmatprep.subr.mxu0 0.0
    %855 = vmatpush1.msra.mxu0 0.0
    %856 = vmatprep.subr.mxu0 0.0
    %857 = vmatpush1.msra.mxu0 0.0
    %858 = vmatprep.subr.mxu0 0.0
    %859 = vmatpush1.msra.mxu0 0.0
    %860 = vmatprep.subr.mxu0 0.0
    %861 = vmatpush1.msra.mxu0 0.0
    %862 = vmatprep.subr.mxu0 0.0
    %863 = vmatpush1.msra.mxu0 0.0
    %864 = vmatprep.subr.mxu0 0.0
    %865 = vmatpush1.msra.mxu0 0.0
    %866 = vmatprep.subr.mxu0 0.0
    %867 = vmatpush1.msra.mxu0 0.0
    %868 = vmatprep.subr.mxu0 0.0
    %869 = vmatpush1.msra.mxu0 0.0
    %870 = vmatprep.subr.mxu0 0.0
    %871 = vmatpush1.msra.mxu0 0.0
    %872 = vmatprep.subr.mxu0 0.0
    %873 = vmatpush1.msra.mxu0 0.0
    %874 = vmatprep.subr.mxu0 0.0
    %875 = vmatpush1.msra.mxu0 0.0
    %876 = vmatprep.subr.mxu0 0.0
    %877 = vmatpush1.msra.mxu0 0.0
    %878 = vmatprep.subr.mxu0 0.0
    %879 = vmatpush1.msra.mxu0 0.0
    %880 = vmatprep.subr.mxu0 0.0
    %881 = vmatpush1.msra.mxu0 0.0
    %882 = vmatprep.subr.mxu0 0.0
    %883 = vmatpush1.msra.mxu0 0.0
    %884 = vmatprep.subr.mxu0 0.0
    %885 = vmatpush1.msra.mxu0 0.0
    %886 = vmatprep.subr.mxu0 0.0
    %887 = vmatpush1.msra.mxu0 0.0
    %888 = vmatprep.mubr.f32.mxu0 0.0
    %889 = vmatmul.mubr.f32.gmra.mrb[0].mxu0 %v822
    %v890 = vpop.f32.mrb[0].mxu0
    %v891 = vadd.f32 %v815, %v890
    %v892 = vpop.f32.mrb[0].mxu0
    %v893 = vadd.f32 %v818, %v892
    %894 = vdwg.mxu0
    %v895 = vmul.f32 %v891, 0.5
    %v896 = vtanh.pop %v895
    %v897 = vadd.f32 %v896, 1.0
    %v898 = vmul.f32 %v897, 0.5
    %v899 = vmul.f32 %v893, 0.5
    %v900 = vtanh.pop %v899
    %v901 = vadd.f32 %v900, 1.0
    %v902 = vmul.f32 %v901, 0.5
    %v903 = vtanh.pop %v893
    %v904 = vmul.f32 %v898, %v810
    %v905 = vmul.f32 %v898, %v903
    %907 = vrot.lane.b32.xlu0 %v905, 64
    %v908 = vpop.permute.xlu0 %907
    %v910 = vadd.f32 %v904, %v908
    %v911 = vtanh.pop %v910
    %v912 = vmul.f32 %v902, %v911
    %v913 = vmax.f32 %v912, 0.0
    %v915 = vsel %vm216, %v913, 0
    %917 = vmatprep.subr.mxu0 0.0
    %918 = vmatpush1.msra.mxu0 %v59
    %919 = vmatprep.subr.mxu0 0.0
    %920 = vmatpush1.msra.mxu0 %v60
    %921 = vmatprep.subr.mxu0 0.0
    %922 = vmatpush1.msra.mxu0 %v61
    %923 = vmatprep.subr.mxu0 0.0
    %924 = vmatpush1.msra.mxu0 %v62
    %925 = vmatprep.subr.mxu0 0.0
    %926 = vmatpush1.msra.mxu0 %v63
    %927 = vmatprep.subr.mxu0 0.0
    %928 = vmatpush1.msra.mxu0 %v64
    %929 = vmatprep.subr.mxu0 0.0
    %930 = vmatpush1.msra.mxu0 %v65
    %931 = vmatprep.subr.mxu0 0.0
    %932 = vmatpush1.msra.mxu0 %v66
    %933 = vmatprep.subr.mxu0 0.0
    %934 = vmatpush1.msra.mxu0 0.0
    %935 = vmatprep.subr.mxu0 0.0
    %936 = vmatpush1.msra.mxu0 0.0
    %937 = vmatprep.subr.mxu0 0.0
    %938 = vmatpush1.msra.mxu0 0.0
    %939 = vmatprep.subr.mxu0 0.0
    %940 = vmatpush1.msra.mxu0 0.0
    %941 = vmatprep.subr.mxu0 0.0
    %942 = vmatpush1.msra.mxu0 0.0
    %943 = vmatprep.subr.mxu0 0.0
    %944 = vmatpush1.msra.mxu0 0.0
    %945 = vmatprep.subr.mxu0 0.0
    %946 = vmatpush1.msra.mxu0 0.0
    %947 = vmatprep.subr.mxu0 0.0
    %948 = vmatpush1.msra.mxu0 0.0
    %949 = vmatprep.subr.mxu0 0.0
    %950 = vmatpush1.msra.mxu0 0.0
    %951 = vmatprep.subr.mxu0 0.0
    %952 = vmatpush1.msra.mxu0 0.0
    %953 = vmatprep.subr.mxu0 0.0
    %954 = vmatpush1.msra.mxu0 0.0
    %955 = vmatprep.subr.mxu0 0.0
    %956 = vmatpush1.msra.mxu0 0.0
    %957 = vmatprep.subr.mxu0 0.0
    %958 = vmatpush1.msra.mxu0 0.0
    %959 = vmatprep.subr.mxu0 0.0
    %960 = vmatpush1.msra.mxu0 0.0
    %961 = vmatprep.subr.mxu0 0.0
    %962 = vmatpush1.msra.mxu0 0.0
    %963 = vmatprep.subr.mxu0 0.0
    %964 = vmatpush1.msra.mxu0 0.0
    %965 = vmatprep.subr.mxu0 0.0
    %966 = vmatpush1.msra.mxu0 0.0
    %967 = vmatprep.subr.mxu0 0.0
    %968 = vmatpush1.msra.mxu0 0.0
    %969 = vmatprep.subr.mxu0 0.0
    %970 = vmatpush1.msra.mxu0 0.0
    %971 = vmatprep.subr.mxu0 0.0
    %972 = vmatpush1.msra.mxu0 0.0
    %973 = vmatprep.subr.mxu0 0.0
    %974 = vmatpush1.msra.mxu0 0.0
    %975 = vmatprep.subr.mxu0 0.0
    %976 = vmatpush1.msra.mxu0 0.0
    %977 = vmatprep.subr.mxu0 0.0
    %978 = vmatpush1.msra.mxu0 0.0
    %979 = vmatprep.subr.mxu0 0.0
    %980 = vmatpush1.msra.mxu0 0.0
    %981 = vmatprep.mubr.f32.mxu0 0.0
    %982 = vmatmul.mubr.f32.gmra.mrb[0].mxu0 %v915
    %v983 = vpop.f32.mrb[0].mxu0
    %v984 = vadd.f32 %v67, %v983
    %v985 = vpop.f32.mrb[0].mxu0
    %986 = vdwg.mxu0
    %988 = vrot.lane.b32.xlu0 %v910, 64
    %v989 = vpop.permute.xlu0 %988
    %v991 = vsel %vm216, %v912, %v989
    %v994 = vcombine.low %v984, %v991
    %v996 = vunpack.c.l.s4 1983009808
    %v997 = vunpack.c.0.s8 %v996
    %v998 = vlaneseq
    %v999 = vshrl.u32 %v998, 7
    %v1000 = vsub.s32 %v997, %v999
    %v1001 = vrot.slane %v994, %v1000
    %1003 = vst [vmem:[%s2] sm:$0xf] %v1001
    // Predicated region
    $region18: #{seeker_rnn_forward.1} parent=1 // pred_check
      _
    $region19: #{seeker_rnn_forward.1} parent=1 // pred_check_branch
      %1005 = sbr.rel (0) target = $region21
    $region20: #{seeker_rnn_forward.1} parent=1 // pred_region
      _
    $region21: #{seeker_rnn_forward.1} parent=1 // pred_fallthru
      _
    // Predicated region
    $region22: #{seeker_rnn_forward.1} parent=1 // pred_check
      _
    $region23: #{seeker_rnn_forward.1} parent=1 // pred_check_branch
      %1007 = sbr.rel (0) target = $region25
    $region24: #{seeker_rnn_forward.1} parent=1 // pred_region
      _
    $region25: #{seeker_rnn_forward.1} parent=1 // pred_fallthru
      _
    %1008 = vsyncpa [#allocation3], 1
    %1009 = vsyncpa [#allocation5], 1

</llo_original>
